<compile_context>
chip_gen: v7x
topology: tpu7x:2x2x1
jax: 0.10.0
libtpu: 0.0.40
codegen_flags: <defaults>
</compile_context>

<pallas_src>
import functools

import jax
import jax.numpy as jnp
import numpy as np
from jax import lax
from jax.experimental import pallas as pl
from jax.experimental.pallas import tpu as pltpu

_MIB = 1024 * 1024


# ----------------------------------------------------------------------------
# Hardware / tiling helpers
# ----------------------------------------------------------------------------
def _vmem_capacity_bytes():
    """Per-core VMEM capacity; conservative fallback if the query fails."""
    try:
        cap = int(pltpu.get_tpu_info().vmem_capacity_bytes)
        if cap > 0:
            return cap
    except Exception:
        pass
    return 64 * _MIB  # v7x per-TensorCore VMEM (smallest current generation)


def _block_byte_target():
    """~1-4 MiB per block: double-buffered in+out (4x block) stays tiny vs VMEM."""
    cap = _vmem_capacity_bytes()
    return int(min(4 * _MIB, max(1 * _MIB, cap // 16)))


def _sublane_align(dtype):
    """Rows per fully-packed vreg sublane group: 8 f32, 16 bf16, 32 int8/fp8."""
    itemsize = jnp.dtype(dtype).itemsize
    return max(8, 32 // max(1, itemsize))


def _round_up(x, mult):
    return ((x + mult - 1) // mult) * mult


def _vmem_limit(block_bytes, param_bytes):
    """Scoped VMEM limit: 2 buffers x (in+out) x block + params + slack."""
    needed = 4 * block_bytes + 4 * param_bytes + 2 * _MIB
    cap = _vmem_capacity_bytes()
    return int(min(0.75 * cap, max(needed, 32 * _MIB)))


# ----------------------------------------------------------------------------
# Kernels
# ----------------------------------------------------------------------------
def _ln_channels_last_kernel(x_ref, w_ref, b_ref, o_ref, *, eps, c):
    """Row-wise LayerNorm over the last axis of a (TM, C) tile."""
    x = x_ref[...].astype(jnp.float32)                       # (TM, C)
    inv_c = 1.0 / float(c)
    # Two-pass (numerically stable) mean/var; cross-lane reductions on the XLU.
    mean = jnp.sum(x, axis=-1, keepdims=True) * inv_c        # (TM, 1)
    xc = x - mean
    var = jnp.sum(xc * xc, axis=-1, keepdims=True) * inv_c   # (TM, 1)
    inv = lax.rsqrt(var + eps)                               # EUP slot
    y = xc * inv
    y = y * w_ref[...].astype(jnp.float32) + b_ref[...].astype(jnp.float32)
    o_ref[...] = y.astype(o_ref.dtype)


def _ln_channels_first_kernel(x_ref, w_ref, b_ref, o_ref, *, eps, c):
    """LayerNorm over the channel axis of a (1, C, TS) tile (NCHW kept native)."""
    x = x_ref[0].astype(jnp.float32)                         # (C, TS)
    inv_c = 1.0 / float(c)
    mean = jnp.sum(x, axis=0, keepdims=True) * inv_c         # (1, TS) sublane reduce
    xc = x - mean
    var = jnp.sum(xc * xc, axis=0, keepdims=True) * inv_c    # (1, TS)
    inv = lax.rsqrt(var + eps)                               # EUP slot
    y = xc * inv
    y = y * w_ref[...].astype(jnp.float32) + b_ref[...].astype(jnp.float32)
    o_ref[0] = y.astype(o_ref.dtype)


# ----------------------------------------------------------------------------
# Wrappers
# ----------------------------------------------------------------------------
def layer_norm_channels_last(x, weight, bias, eps=1e-6):
    """LayerNorm over the last dim of x (any rank >= 2)."""
    orig_shape = x.shape
    c = int(orig_shape[-1])
    m = int(np.prod(orig_shape[:-1]))
    x2 = x.reshape(m, c)                       # contiguous reshape, no data move

    itemsize = jnp.dtype(x.dtype).itemsize
    align = _sublane_align(x.dtype)
    target = _block_byte_target()

    # Rows per block from the byte budget (mem-bound op: big blocks amortize
    # the per-grid-step overhead), aligned to the dtype sublane pack.
    tm = max(align, (target // max(1, c * itemsize)) // align * align)
    if m <= align:
        tm = m                                  # full extent: always a legal block
    else:
        # Keep >= 2 grid steps so both v7x TensorCores get work.
        tm = min(tm, _round_up(pl.cdiv(m, 2), align))
    grid_m = pl.cdiv(m, tm)                     # padded tail block handles m % tm

    # Prefer an even step count for the 2-TensorCore split when cheap.
    if grid_m > 2 and grid_m % 2 == 1:
        tm_alt = _round_up(pl.cdiv(m, grid_m + 1), align)
        if tm_alt >= align and pl.cdiv(m, tm_alt) % 2 == 0:
            tm = tm_alt
            grid_m = pl.cdiv(m, tm)

    block_bytes = tm * c * itemsize
    param_bytes = 2 * c * jnp.dtype(weight.dtype).itemsize
    cost = pl.CostEstimate(
        flops=8 * m * c,
        transcendentals=m,
        bytes_accessed=2 * m * c * itemsize + param_bytes,
    )

    # NOTE: if C is not a multiple of 128 (e.g. ConvNeXt C=96), the output
    # stores are lane-masked; padding C at the boundary costs a full HBM copy,
    # so masked stores are accepted knowingly here.
    out = pl.pallas_call(
        functools.partial(_ln_channels_last_kernel, eps=float(eps), c=c),
        out_shape=jax.ShapeDtypeStruct((m, c), x.dtype),
        grid=(grid_m,),
        in_specs=[
            pl.BlockSpec((tm, c), lambda i: (i, 0)),
            pl.BlockSpec((1, c), lambda i: (0, 0)),   # VMEM-resident across steps
            pl.BlockSpec((1, c), lambda i: (0, 0)),   # VMEM-resident across steps
        ],
        out_specs=pl.BlockSpec((tm, c), lambda i: (i, 0)),
        compiler_params=pltpu.CompilerParams(
            dimension_semantics=("parallel",),
            vmem_limit_bytes=_vmem_limit(block_bytes, param_bytes),
        ),
        cost_estimate=cost,
    )(x2, weight.reshape(1, c), bias.reshape(1, c))
    return out.reshape(orig_shape)


def layer_norm_channels_first(x, weight, bias, eps=1e-6):
    """LayerNorm over dim 1 of an NCHW tensor (computed natively in NCHW)."""
    b, c, h, w = (int(d) for d in x.shape)
    hw = h * w
    x3 = x.reshape(b, c, hw)                   # contiguous reshape, no data move

    itemsize = jnp.dtype(x.dtype).itemsize
    target = _block_byte_target()

    # Spatial (lane) tile from the byte budget, multiples of 128 for dense
    # stores; ts == hw (full extent) is always legal when hw fits the budget.
    if hw <= 128:
        ts = hw
    else:
        ts = max(128, (target // max(1, c * itemsize)) // 128 * 128)
        if ts >= hw:
            ts = hw
        # If batch alone gives < 2 grid steps, split spatially for v7x's 2 TCs.
        if b * pl.cdiv(hw, ts) < 2:
            ts = max(128, _round_up(pl.cdiv(hw, 2), 128))

    grid = (b, pl.cdiv(hw, ts))                # padded tail block handles hw % ts

    block_bytes = c * ts * itemsize
    param_bytes = 2 * c * jnp.dtype(weight.dtype).itemsize
    cost = pl.CostEstimate(
        flops=8 * b * c * hw,
        transcendentals=b * hw,
        bytes_accessed=2 * b * c * hw * itemsize + param_bytes,
    )

    out = pl.pallas_call(
        functools.partial(_ln_channels_first_kernel, eps=float(eps), c=c),
        out_shape=jax.ShapeDtypeStruct((b, c, hw), x.dtype),
        grid=grid,
        in_specs=[
            pl.BlockSpec((1, c, ts), lambda bi, si: (bi, 0, si)),
            pl.BlockSpec((c, 1), lambda bi, si: (0, 0)),   # resident across steps
            pl.BlockSpec((c, 1), lambda bi, si: (0, 0)),   # resident across steps
        ],
        out_specs=pl.BlockSpec((1, c, ts), lambda bi, si: (bi, 0, si)),
        compiler_params=pltpu.CompilerParams(
            dimension_semantics=("parallel", "parallel"),
            vmem_limit_bytes=_vmem_limit(block_bytes, param_bytes),
        ),
        cost_estimate=cost,
    )(x3, weight.reshape(c, 1), bias.reshape(c, 1))
    return out.reshape(b, c, h, w)


def layer_norm(x, weight, bias, eps=1e-6, data_format="channels_last"):
    if data_format == "channels_last":
        return layer_norm_channels_last(x, weight, bias, eps)
    elif data_format == "channels_first":
        return layer_norm_channels_first(x, weight, bias, eps)
    raise NotImplementedError(data_format)


# ----------------------------------------------------------------------------
# Pure-JAX references (PyTorch semantics)
# ----------------------------------------------------------------------------
def _ref_channels_last(x, w, b, eps):
    mean = jnp.mean(x, axis=-1, keepdims=True)
    var = jnp.mean((x - mean) ** 2, axis=-1, keepdims=True)
    return (x - mean) / jnp.sqrt(var + eps) * w + b


def _ref_channels_first(x, w, b, eps):
    u = jnp.mean(x, axis=1, keepdims=True)
    s = jnp.mean((x - u) ** 2, axis=1, keepdims=True)
    xn = (x - u) / jnp.sqrt(s + eps)
    return w[None, :, None, None] * xn + b[None, :, None, None]


# ----------------------------------------------------------------------------
# Demo / correctness check
# ----------------------------------------------------------------------------
if __name__ == "__main__":
    key = jax.random.PRNGKey(0)
    k1, k2, k3, k4, k5, k6 = jax.random.split(key, 6)
    eps = 1e-6

    # channels_last: (B, H, W, C) with a row count (2*7*9 = 126) that is NOT a
    # multiple of the row tile, exercising the padded-tail path.
    B, H, W, C_last = 2, 7, 9, 128
    x_cl = jax.random.normal(k1, (B, H, W, C_last), jnp.float32)
    w_cl = 1.0 + 0.1 * jax.random.normal(k2, (C_last,), jnp.float32)
    b_cl = 0.1 * jax.random.normal(k3, (C_last,), jnp.float32)

    out_cl = jax.block_until_ready(
        layer_norm(x_cl, w_cl, b_cl, eps, data_format="channels_last"))
    ref_cl = jax.block_until_ready(_ref_channels_last(x_cl, w_cl, b_cl, eps))
    np.testing.assert_allclose(np.asarray(out_cl), np.asarray(ref_cl),
                               rtol=1e-5, atol=1e-5)

    # channels_first: (B, C, H, W) with small C=4, spatial 16x16.
    C_first, Hf, Wf = 4, 16, 16
    x_cf = jax.random.normal(k4, (B, C_first, Hf, Wf), jnp.float32)
    w_cf = 1.0 + 0.1 * jax.random.normal(k5, (C_first,), jnp.float32)
    b_cf = 0.1 * jax.random.normal(k6, (C_first,), jnp.float32)

    out_cf = jax.block_until_ready(
        layer_norm(x_cf, w_cf, b_cf, eps, data_format="channels_first"))
    ref_cf = jax.block_until_ready(_ref_channels_first(x_cf, w_cf, b_cf, eps))
    np.testing.assert_allclose(np.asarray(out_cf), np.asarray(ref_cf),
                               rtol=1e-5, atol=1e-5)

    assert out_cl.shape == (B, H, W, C_last)
    assert out_cf.shape == (B, C_first, Hf, Wf)
    print("KERNEL_OK")
</pallas_src>

<mosaic_0001>
module attributes {stable_mosaic.version = 11 : i64} {
  func.func @_ln_channels_last_kernel(%arg0: i32, %arg1: memref<64x128xf32, #tpu.memory_space<vmem>>, %arg2: memref<1x128xf32, #tpu.memory_space<vmem>>, %arg3: memref<1x128xf32, #tpu.memory_space<vmem>>, %arg4: memref<64x128xf32, #tpu.memory_space<vmem>>) attributes {dimension_semantics = [#tpu.dimension_semantics<parallel>], iteration_bounds = array<i64: 2>, scalar_prefetch = 0 : i64, scratch_operands = 0 : i64, tpu.core_type = #tpu.core_type<tc>, window_params = [{transform_indices = @transform_0, window_bounds = array<i64: 64, 128>}, {pipeline_mode = #tpu.pipeline_mode<synchronous>, transform_indices = @transform_1, window_bounds = array<i64: 1, 128>}, {pipeline_mode = #tpu.pipeline_mode<synchronous>, transform_indices = @transform_2, window_bounds = array<i64: 1, 128>}, {transform_indices = @transform_3, window_bounds = array<i64: 64, 128>}]} {
    %c0 = arith.constant 0 : index
    %c0_0 = arith.constant 0 : index
    %0 = vector.load %arg1[%c0, %c0_0] : memref<64x128xf32, #tpu.memory_space<vmem>>, vector<64x128xf32>
    %cst = arith.constant dense<0.000000e+00> : vector<64xf32>
    %1 = vector.multi_reduction <add>, %0, %cst [1] : vector<64x128xf32> to vector<64xf32>
    %2 = vector.shape_cast %1 : vector<64xf32> to vector<64x1xf32>
    %cst_1 = arith.constant 7.812500e-03 : f32
    %3 = vector.broadcast %cst_1 : f32 to vector<64x1xf32>
    %4 = arith.mulf %2, %3 : vector<64x1xf32>
    %5 = vector.broadcast %4 : vector<64x1xf32> to vector<64x128xf32>
    %6 = arith.subf %0, %5 : vector<64x128xf32>
    %7 = arith.mulf %6, %6 : vector<64x128xf32>
    %cst_2 = arith.constant dense<0.000000e+00> : vector<64xf32>
    %8 = vector.multi_reduction <add>, %7, %cst_2 [1] : vector<64x128xf32> to vector<64xf32>
    %9 = vector.shape_cast %8 : vector<64xf32> to vector<64x1xf32>
    %cst_3 = arith.constant 7.812500e-03 : f32
    %10 = vector.broadcast %cst_3 : f32 to vector<64x1xf32>
    %11 = arith.mulf %9, %10 : vector<64x1xf32>
    %cst_4 = arith.constant 9.99999997E-7 : f32
    %12 = vector.broadcast %cst_4 : f32 to vector<64x1xf32>
    %13 = arith.addf %11, %12 : vector<64x1xf32>
    %14 = math.rsqrt %13 : vector<64x1xf32>
    %15 = vector.broadcast %14 : vector<64x1xf32> to vector<64x128xf32>
    %16 = arith.mulf %6, %15 : vector<64x128xf32>
    %c0_5 = arith.constant 0 : index
    %c0_6 = arith.constant 0 : index
    %17 = vector.load %arg2[%c0_5, %c0_6] : memref<1x128xf32, #tpu.memory_space<vmem>>, vector<1x128xf32>
    %18 = vector.broadcast %17 : vector<1x128xf32> to vector<64x128xf32>
    %19 = arith.mulf %16, %18 : vector<64x128xf32>
    %c0_7 = arith.constant 0 : index
    %c0_8 = arith.constant 0 : index
    %20 = vector.load %arg3[%c0_7, %c0_8] : memref<1x128xf32, #tpu.memory_space<vmem>>, vector<1x128xf32>
    %21 = vector.broadcast %20 : vector<1x128xf32> to vector<64x128xf32>
    %22 = arith.addf %19, %21 : vector<64x128xf32>
    %c0_9 = arith.constant 0 : index
    %c0_10 = arith.constant 0 : index
    %23 = vector.load %arg4[%c0_9, %c0_10] : memref<64x128xf32, #tpu.memory_space<vmem>>, vector<64x128xf32>
    tpu.vector_store %arg4[%c0_9, %c0_10], %22 {strides = array<i32>} : memref<64x128xf32, #tpu.memory_space<vmem>>, vector<64x128xf32>,
    return
  }
  func.func @transform_0(%arg0: i32) -> (i32, i32) {
    %c0_i32 = arith.constant 0 : i32
    %c0_i32_0 = arith.constant 0 : i32
    return %arg0, %c0_i32 : i32, i32
  }
  func.func @transform_1(%arg0: i32) -> (i32, i32) {
    %c0_i32 = arith.constant 0 : i32
    %c0_i32_0 = arith.constant 0 : i32
    %c0_i32_1 = arith.constant 0 : i32
    return %c0_i32, %c0_i32_0 : i32, i32
  }
  func.func @transform_2(%arg0: i32) -> (i32, i32) {
    %c0_i32 = arith.constant 0 : i32
    %c0_i32_0 = arith.constant 0 : i32
    %c0_i32_1 = arith.constant 0 : i32
    return %c0_i32, %c0_i32_0 : i32, i32
  }
  func.func @transform_3(%arg0: i32) -> (i32, i32) {
    %c0_i32 = arith.constant 0 : i32
    %c0_i32_0 = arith.constant 0 : i32
    return %arg0, %c0_i32 : i32, i32
  }
}

</mosaic_0001>

<llo_original>
// kernel: tpu_custom_call.1
$region0: #{tpu_custom_call.1}
  #allocation0 [shape = 'u32[]', space=smem, size = 0x4, offset = 0x4, fixed_abs, tag = 'smem constant byte address 0x4 - core index']
  #allocation1 [shape = 'u32[144,128]{1,0:T(1,128)}', space=vmem, size = 0x12000, scoped, tag = 'internal scratch']
  %s0 = inlined_call_operand.hbm [shape: f32[126,128], index: 0, kind: input, shape index: {}]
  %s1 = inlined_call_operand.vmem [shape: f32[1,128], index: 1, kind: input, shape index: {}]
  %s2 = inlined_call_operand.vmem [shape: f32[1,128], index: 2, kind: input, shape index: {}]
  %s3 = inlined_call_operand.hbm [shape: f32[126,128], index: 3, kind: output, shape index: {}]
  %s4 = sld [smem:[#allocation0]]
  $region49: #{tpu_custom_call.1} parent=0
    _
  %s6 = ssub.s32 1, %s4
  %s7 = scalar_select 0, %s6, %s4
  $region1: #{tpu_custom_call.1} parent=0
    #allocation2 [shape = 'u8[65536]{0}', space=vmem, size = 0x10000, scoped, tag = 'input window, operand 0']
    #allocation3 [shape = 's32[2]{0}', space=sflag, size = 0x8, scoped, tag = 'scoped memory for tpu_custom_call.1']
    #allocation4 [shape = 's32[2]{0}', space=sflag, size = 0x8, scoped, tag = 'scoped memory for tpu_custom_call.1']
    #allocation5 [shape = 'u8[65536]{0}', space=vmem, size = 0x10000, scoped, tag = 'output window, operand 0']
    %8 = vsyncpa [#allocation3], 0
    %s9 = scalar_lea.sflag [#allocation3], 1
    %10 = vsyncpa %s9, 0
    %11 = vsyncpa [#allocation4], 0
    %s12 = scalar_lea.sflag [#allocation4], 1
    %13 = vsyncpa %s12, 0
    loop: start=0, step=1, limit=4
    $region2: #{tpu_custom_call.1} parent=1 // loop_pre_header
      _
    $region3: #{tpu_custom_call.1} parent=1 // loop_header
      %s15 = sphi 0, %s19
      %p16 = scmp.ge.s32.totalorder %s15, 4
      %s25 = sphi 0, %s27
      %s28 = sphi 0, %s25
      %s29 = sphi 0, %s28
      %s45 = sphi 0, %s29
      %s49 = sphi 0, %s49
      %s51 = sphi 0, %s49
      %s52 = sphi 0, %s51
      %s66 = sphi 0, %s52
      %s70 = sphi 0, %s70
      %s72 = sphi 0, %s70
      %s73 = sphi 0, %s72
      %s87 = sphi 0, %s73
      %s93 = sphi 0, %s95
      %s96 = sphi 0, %s93
      %s97 = sphi 0, %s96
      %s113 = sphi 0, %s97
    $region4: #{tpu_custom_call.1} parent=1 // loop_header_branch
      %18 = sbr.rel (%p16) target = $region8
    $region5: #{tpu_custom_call.1} parent=1 // loop_body
      %s20 = ssub.s32 %s15, 1
      %s21 = ssub.s32 %s15, 2
      %s22 = sadd.s32 %s15, 1
      %s23 = ssub.s32 %s15, %s22
      %p24 = scmp.eq.s32.totalorder %s23, 0
      %s26 = sadd.s32 %s25, 1
      %s27 = scalar_select %p24, %s25, %s26
      %p30 = pneg %p24
      %p31 = scmp.eq.s32.totalorder %s15, 1
      %p32 = por %p30, %p31
      %p33 = scmp.ne.s32.totalorder %s25, %s28
      %p34 = scmp.eq.s32.totalorder %s15, 0
      %p35 = por %p33, %p34
      %p36 = scmp.ne.s32.totalorder %s25, %s28
      %p37 = scmp.eq.s32.totalorder %s20, 1
      %p38 = por %p36, %p37
      %p39 = scmp.ne.s32.totalorder %s28, %s29
      %p40 = scmp.eq.s32.totalorder %s20, 0
      %p41 = por %p39, %p40
      %p42 = scmp.ne.s32.totalorder %s28, %s29
      %p43 = scmp.eq.s32.totalorder %s21, 1
      %p44 = por %p42, %p43
      %p46 = scmp.ne.s32.totalorder %s29, %s45
      %p47 = scmp.eq.s32.totalorder %s21, 0
      %p48 = por %p46, %p47
      %s50 = sadd.s32 %s49, 1
      %p53 = scmp.eq.s32.totalorder %s15, 1
      %p54 = scmp.ne.s32.totalorder %s49, %s51
      %p55 = scmp.eq.s32.totalorder %s15, 0
      %p56 = por %p54, %p55
      %p57 = scmp.ne.s32.totalorder %s49, %s51
      %p58 = scmp.eq.s32.totalorder %s20, 1
      %p59 = por %p57, %p58
      %p60 = scmp.ne.s32.totalorder %s51, %s52
      %p61 = scmp.eq.s32.totalorder %s20, 0
      %p62 = por %p60, %p61
      %p63 = scmp.ne.s32.totalorder %s51, %s52
      %p64 = scmp.eq.s32.totalorder %s21, 1
      %p65 = por %p63, %p64
      %p67 = scmp.ne.s32.totalorder %s52, %s66
      %p68 = scmp.eq.s32.totalorder %s21, 0
      %p69 = por %p67, %p68
      %s71 = sadd.s32 %s70, 1
      %p74 = scmp.eq.s32.totalorder %s15, 1
      %p75 = scmp.ne.s32.totalorder %s70, %s72
      %p76 = scmp.eq.s32.totalorder %s15, 0
      %p77 = por %p75, %p76
      %p78 = scmp.ne.s32.totalorder %s70, %s72
      %p79 = scmp.eq.s32.totalorder %s20, 1
      %p80 = por %p78, %p79
      %p81 = scmp.ne.s32.totalorder %s72, %s73
      %p82 = scmp.eq.s32.totalorder %s20, 0
      %p83 = por %p81, %p82
      %p84 = scmp.ne.s32.totalorder %s72, %s73
      %p85 = scmp.eq.s32.totalorder %s21, 1
      %p86 = por %p84, %p85
      %p88 = scmp.ne.s32.totalorder %s73, %s87
      %p89 = scmp.eq.s32.totalorder %s21, 0
      %p90 = por %p88, %p89
      %s91 = ssub.s32 %s15, %s22
      %p92 = scmp.eq.s32.totalorder %s91, 0
      %s94 = sadd.s32 %s93, 1
      %s95 = scalar_select %p92, %s93, %s94
      %p98 = pneg %p92
      %p99 = scmp.eq.s32.totalorder %s15, 1
      %p100 = por %p98, %p99
      %p101 = scmp.ne.s32.totalorder %s93, %s96
      %p102 = scmp.eq.s32.totalorder %s15, 0
      %p103 = por %p101, %p102
      %p104 = scmp.ne.s32.totalorder %s93, %s96
      %p105 = scmp.eq.s32.totalorder %s20, 1
      %p106 = por %p104, %p105
      %p107 = scmp.ne.s32.totalorder %s96, %s97
      %p108 = scmp.eq.s32.totalorder %s20, 0
      %p109 = por %p107, %p108
      %p110 = scmp.ne.s32.totalorder %s96, %s97
      %p111 = scmp.eq.s32.totalorder %s21, 1
      %p112 = por %p110, %p111
      %p114 = scmp.ne.s32.totalorder %s97, %s113
      %p115 = scmp.eq.s32.totalorder %s21, 0
      %p116 = por %p114, %p115
      %p117 = scmp.le.s32.totalorder 1, %s15
      %p118 = scmp.lt.s32.totalorder %s15, 3
      %p119 = pnand %p117, %p118
      %p120 = pneg %p119
      // Predicated region
      $region9: #{tpu_custom_call.1} parent=5 // pred_check
        _
      $region10: #{tpu_custom_call.1} parent=5 // pred_check_branch
        %122 = sbr.rel (%p119) target = $region12
      $region11: #{tpu_custom_call.1} parent=5 // pred_region
        %s123 = ssub.s32 %s15, 1
        // Predicated region
        $region13: #{tpu_custom_call.1} parent=11 // pred_check
          %p124 = pneg %p62
        $region14: #{tpu_custom_call.1} parent=11 // pred_check_branch
          %126 = sbr.rel (%p124) target = $region16
        $region15: #{tpu_custom_call.1} parent=11 // pred_region
          _
        $region16: #{tpu_custom_call.1} parent=11 // pred_fallthru
          _
        // Predicated region
        $region17: #{tpu_custom_call.1} parent=11 // pred_check
          %p127 = pneg %p83
        $region18: #{tpu_custom_call.1} parent=11 // pred_check_branch
          %129 = sbr.rel (%p127) target = $region20
        $region19: #{tpu_custom_call.1} parent=11 // pred_region
          _
        $region20: #{tpu_custom_call.1} parent=11 // pred_fallthru
          _
      $region12: #{tpu_custom_call.1} parent=5 // pred_fallthru
        _
      %p130 = scmp.lt.s32.totalorder %s15, 2
      // Predicated region
      $region21: #{tpu_custom_call.1} parent=5 // pred_check
        %p131 = pneg %p130
      $region22: #{tpu_custom_call.1} parent=5 // pred_check_branch
        %133 = sbr.rel (%p131) target = $region24
      $region23: #{tpu_custom_call.1} parent=5 // pred_region
        // Predicated region
        $region25: #{tpu_custom_call.1} parent=23 // pred_check
          %p134 = pneg %p35
        $region26: #{tpu_custom_call.1} parent=23 // pred_check_branch
          %136 = sbr.rel (%p134) target = $region28
        $region27: #{tpu_custom_call.1} parent=23 // pred_region
          %s137 = sand.u32 %s25, 1
          %s138 = scalar_lea.sflag [#allocation3], %s137
          %s139 = sand.u32 %s25, 1
          %s140 = smul.addr %s139, 64
          %s141 = scalar_lea.vmem [#allocation2], %s140
          %s142 = smul.u32 8, %s15
          %s144 = ssub.s32 1024, 1024
          %145 = vsyncadd %s138, %s144
          %s146 = smul.addr %s142, 128
          %s147 = scalar_lea.hbm %s0, %s146
          %s148 = sshll.u32 %s141, 4
          %s149 = int_to_ptr.vmem [resolvable:$true] %s148
          %154 = dma.hbm_to_vmem [thread:$0]  %s147, 1024, %s149, %s138, 128, 128, 8
        $region28: #{tpu_custom_call.1} parent=23 // pred_fallthru
          _
      $region24: #{tpu_custom_call.1} parent=5 // pred_fallthru
        _
      %p155 = scmp.le.s32.totalorder 1, %s15
      %p156 = scmp.lt.s32.totalorder %s15, 3
      %p157 = pnand %p155, %p156
      %p158 = pneg %p157
      // Predicated region
      $region29: #{tpu_custom_call.1} parent=5 // pred_check
        _
      $region30: #{tpu_custom_call.1} parent=5 // pred_check_branch
        %160 = sbr.rel (%p157) target = $region32
      $region31: #{tpu_custom_call.1} parent=5 // pred_region
        %s161 = ssub.s32 %s15, 1
        %s162 = sand.u32 %s28, 1
        %s163 = scalar_lea.sflag [#allocation3], %s162
        %s164 = sand.u32 %s28, 1
        %s165 = smul.addr %s164, 64
        %s166 = scalar_lea.vmem [#allocation2], %s165
        // Predicated region
        $region33: #{tpu_custom_call.1} parent=31 // pred_check
          %p167 = pneg %p41
        $region34: #{tpu_custom_call.1} parent=31 // pred_check_branch
          %169 = sbr.rel (%p167) target = $region36
        $region35: #{tpu_custom_call.1} parent=31 // pred_region
          %170 = dma.done %s163, 1024
        $region36: #{tpu_custom_call.1} parent=31 // pred_fallthru
          _
        %s171 = sand.u32 %s28, 1
        %s172 = scalar_lea.sflag [#allocation3], %s171
        %s173 = sand.u32 %s28, 1
        %s174 = smul.addr %s173, 64
        %s175 = scalar_lea.vmem [#allocation2], %s174
        %p176 = pneg %p41
        %p177 = pneg %p38
        %p178 = pneg %p62
        %p179 = pneg %p59
        %p180 = pneg %p83
        %p181 = pneg %p80
        %p182 = pneg %p109
        %p183 = pneg %p106
        %s184 = sand.u32 %s96, 1
        %s185 = scalar_lea.sflag [#allocation4], %s184
        %s186 = sand.u32 %s96, 1
        %s187 = smul.addr %s186, 64
        %s188 = scalar_lea.vmem [#allocation5], %s187
        %s189 = smul.u32 8, %s20
        %s190 = smul.u32 8, %s20
        %v191 = vld [vmem:[%s166] sm:$0xff]
        %v192 = vld [vmem:[%s166 + $0x8] sm:$0xff]
        %v193 = vld [vmem:[%s166 + $0x10] sm:$0xff]
        %v194 = vld [vmem:[%s166 + $0x18] sm:$0xff]
        %v195 = vld [vmem:[%s166 + $0x20] sm:$0xff]
        %v196 = vld [vmem:[%s166 + $0x28] sm:$0xff]
        %v197 = vld [vmem:[%s166 + $0x30] sm:$0xff]
        %v198 = vld [vmem:[%s166 + $0x38] sm:$0xff]
        %199 = vadd.xlane.f32.xlu0 %v191
        %v200 = vpop.xlane.xlu0 %199
        %201 = vadd.xlane.f32.xlu0 %v192
        %v202 = vpop.xlane.xlu0 %201
        %203 = vadd.xlane.f32.xlu0 %v193
        %v204 = vpop.xlane.xlu0 %203
        %205 = vadd.xlane.f32.xlu0 %v194
        %v206 = vpop.xlane.xlu0 %205
        %207 = vadd.xlane.f32.xlu0 %v195
        %v208 = vpop.xlane.xlu0 %207
        %209 = vadd.xlane.f32.xlu0 %v196
        %v210 = vpop.xlane.xlu0 %209
        %211 = vadd.xlane.f32.xlu0 %v197
        %v212 = vpop.xlane.xlu0 %211
        %213 = vadd.xlane.f32.xlu0 %v198
        %v214 = vpop.xlane.xlu0 %213
        %v215 = vmul.f32 %v200, 0.0078125
        %v216 = vmul.f32 %v202, 0.0078125
        %v217 = vmul.f32 %v204, 0.0078125
        %v218 = vmul.f32 %v206, 0.0078125
        %v219 = vmul.f32 %v208, 0.0078125
        %v220 = vmul.f32 %v210, 0.0078125
        %v221 = vmul.f32 %v212, 0.0078125
        %v222 = vmul.f32 %v214, 0.0078125
        %v223 = vsub.f32 %v191, %v215
        %v224 = vsub.f32 %v192, %v216
        %v225 = vsub.f32 %v193, %v217
        %v226 = vsub.f32 %v194, %v218
        %v227 = vsub.f32 %v195, %v219
        %v228 = vsub.f32 %v196, %v220
        %v229 = vsub.f32 %v197, %v221
        %v230 = vsub.f32 %v198, %v222
        %v231 = vmul.f32 %v223, %v223
        %v232 = vmul.f32 %v224, %v224
        %v233 = vmul.f32 %v225, %v225
        %v234 = vmul.f32 %v226, %v226
        %v235 = vmul.f32 %v227, %v227
        %v236 = vmul.f32 %v228, %v228
        %v237 = vmul.f32 %v229, %v229
        %v238 = vmul.f32 %v230, %v230
        %239 = vadd.xlane.f32.xlu0 %v231
        %v240 = vpop.xlane.xlu0 %239
        %241 = vadd.xlane.f32.xlu0 %v232
        %v242 = vpop.xlane.xlu0 %241
        %243 = vadd.xlane.f32.xlu0 %v233
        %v244 = vpop.xlane.xlu0 %243
        %245 = vadd.xlane.f32.xlu0 %v234
        %v246 = vpop.xlane.xlu0 %245
        %247 = vadd.xlane.f32.xlu0 %v235
        %v248 = vpop.xlane.xlu0 %247
        %249 = vadd.xlane.f32.xlu0 %v236
        %v250 = vpop.xlane.xlu0 %249
        %251 = vadd.xlane.f32.xlu0 %v237
        %v252 = vpop.xlane.xlu0 %251
        %253 = vadd.xlane.f32.xlu0 %v238
        %v254 = vpop.xlane.xlu0 %253
        %v255 = vmul.f32 %v240, 0.0078125
        %v256 = vmul.f32 %v242, 0.0078125
        %v257 = vmul.f32 %v244, 0.0078125
        %v258 = vmul.f32 %v246, 0.0078125
        %v259 = vmul.f32 %v248, 0.0078125
        %v260 = vmul.f32 %v250, 0.0078125
        %v261 = vmul.f32 %v252, 0.0078125
        %v262 = vmul.f32 %v254, 0.0078125
        %v263 = vadd.f32 %v255, 1e-06
        %v264 = vadd.f32 %v256, 1e-06
        %v265 = vadd.f32 %v257, 1e-06
        %v266 = vadd.f32 %v258, 1e-06
        %v267 = vadd.f32 %v259, 1e-06
        %v268 = vadd.f32 %v260, 1e-06
        %v269 = vadd.f32 %v261, 1e-06
        %v270 = vadd.f32 %v262, 1e-06
        %v271 = vrsqrt.pop %v263
        %v272 = vrsqrt.pop %v264
        %v273 = vrsqrt.pop %v265
        %v274 = vrsqrt.pop %v266
        %v275 = vrsqrt.pop %v267
        %v276 = vrsqrt.pop %v268
        %v277 = vrsqrt.pop %v269
        %v278 = vrsqrt.pop %v270
        %v279 = vmul.f32 %v223, %v271
        %v280 = vmul.f32 %v224, %v272
        %v281 = vmul.f32 %v225, %v273
        %v282 = vmul.f32 %v226, %v274
        %v283 = vmul.f32 %v227, %v275
        %v284 = vmul.f32 %v228, %v276
        %v285 = vmul.f32 %v229, %v277
        %v286 = vmul.f32 %v230, %v278
        %v287 = vld [vmem:[%s1] sm:$0x1]
        %v289 = vlaneseq
        %v290 = vshrl.u32 %v289, 7
        %v291 = vsub.s32 0, %v290
        %v292 = vrot.slane %v287, %v291
        %v294 = vmul.f32 %v279, %v292
        %v295 = vmul.f32 %v280, %v292
        %v296 = vmul.f32 %v281, %v292
        %v297 = vmul.f32 %v282, %v292
        %v298 = vmul.f32 %v283, %v292
        %v299 = vmul.f32 %v284, %v292
        %v300 = vmul.f32 %v285, %v292
        %v301 = vmul.f32 %v286, %v292
        %v302 = vld [vmem:[%s2] sm:$0x1]
        %v304 = vlaneseq
        %v305 = vshrl.u32 %v304, 7
        %v306 = vsub.s32 0, %v305
        %v307 = vrot.slane %v302, %v306
        %v309 = vadd.f32 %v294, %v307
        %v310 = vadd.f32 %v295, %v307
        %v311 = vadd.f32 %v296, %v307
        %v312 = vadd.f32 %v297, %v307
        %v313 = vadd.f32 %v298, %v307
        %v314 = vadd.f32 %v299, %v307
        %v315 = vadd.f32 %v300, %v307
        %v316 = vadd.f32 %v301, %v307
        %317 = vst [vmem:[%s188] sm:$0xff] %v309
        %318 = vst [vmem:[%s188 + $0x8] sm:$0xff] %v310
        %319 = vst [vmem:[%s188 + $0x10] sm:$0xff] %v311
        %320 = vst [vmem:[%s188 + $0x18] sm:$0xff] %v312
        %321 = vst [vmem:[%s188 + $0x20] sm:$0xff] %v313
        %322 = vst [vmem:[%s188 + $0x28] sm:$0xff] %v314
        %323 = vst [vmem:[%s188 + $0x30] sm:$0xff] %v315
        %324 = vst [vmem:[%s188 + $0x38] sm:$0xff] %v316
        %s325 = sand.u32 %s96, 1
        %s326 = scalar_lea.sflag [#allocation4], %s325
        %s327 = sand.u32 %s96, 1
        %s328 = smul.addr %s327, 64
        %s329 = scalar_lea.vmem [#allocation5], %s328
        // Predicated region
        $region37: #{tpu_custom_call.1} parent=31 // pred_check
          %p330 = pneg %p106
        $region38: #{tpu_custom_call.1} parent=31 // pred_check_branch
          %332 = sbr.rel (%p330) target = $region40
        $region39: #{tpu_custom_call.1} parent=31 // pred_region
          %s333 = smul.u32 8, %s20
          %s335 = ssub.s32 1024, 1024
          %336 = vsyncadd %s326, %s335
          %s337 = smul.addr %s333, 128
          %s338 = scalar_lea.hbm %s3, %s337
          %s339 = sshll.u32 %s329, 4
          %s340 = int_to_ptr.vmem [resolvable:$true] %s339
          %345 = dma.vmem_to_hbm [thread:$0]  %s340, 1024, %s338, %s326, 128, 128, 8
        $region40: #{tpu_custom_call.1} parent=31 // pred_fallthru
          _
      $region32: #{tpu_custom_call.1} parent=5 // pred_fallthru
        _
      %p346 = scmp.le.s32.totalorder 2, %s15
      // Predicated region
      $region41: #{tpu_custom_call.1} parent=5 // pred_check
        %p347 = pneg %p346
      $region42: #{tpu_custom_call.1} parent=5 // pred_check_branch
        %349 = sbr.rel (%p347) target = $region44
      $region43: #{tpu_custom_call.1} parent=5 // pred_region
        %s350 = ssub.s32 %s15, 2
        // Predicated region
        $region45: #{tpu_custom_call.1} parent=43 // pred_check
          %p351 = pneg %p112
        $region46: #{tpu_custom_call.1} parent=43 // pred_check_branch
          %353 = sbr.rel (%p351) target = $region48
        $region47: #{tpu_custom_call.1} parent=43 // pred_region
          %s354 = sand.u32 %s97, 1
          %s355 = scalar_lea.sflag [#allocation4], %s354
          %s356 = sand.u32 %s97, 1
          %s357 = smul.addr %s356, 64
          %s358 = scalar_lea.vmem [#allocation5], %s357
          %359 = dma.done %s355, 1024
        $region48: #{tpu_custom_call.1} parent=43 // pred_fallthru
          _
      $region44: #{tpu_custom_call.1} parent=5 // pred_fallthru
        _
    $region6: #{tpu_custom_call.1} parent=1 // loop_footer
      %s19 = sadd.s32 1, %s15
    $region7: #{tpu_custom_call.1} parent=1 // loop_footer_branch
      %14 = sbr.rel target = $region3
    $region8: #{tpu_custom_call.1} parent=1 // loop_exit
      _
    %360 = vsyncpa [#allocation3], 1
    %s361 = scalar_lea.sflag [#allocation3], 1
    %362 = vsyncpa %s361, 1
    %363 = vsyncpa [#allocation4], 1
    %s364 = scalar_lea.sflag [#allocation4], 1
    %365 = vsyncpa %s364, 1

</llo_original>
